<compile_context>
chip_gen: v5e
topology: v5e:2x2
jax: 0.10.0
libtpu: 0.0.40
codegen_flags: <defaults>
</compile_context>

<pallas_src>
import jax
import jax.numpy as jnp
from jax.experimental import pallas as pl
from jax.experimental.pallas import tpu as pltpu


def _round_up(n, m):
    return (n + m - 1) // m * m


def _make_mlp_kernel(num_hidden):
    def kernel(*refs):
        x_ref, o_ref = refs[0], refs[-1]
        wb = refs[1:-1]  # w0, b0, w1, b1, ..., wf, bf

        # Feature-major: put the batch in lanes. Transpose the tile once (XLU).
        h = x_ref[...].T.astype(jnp.float32)              # (D_in, bt)
        for l in range(num_hidden):
            w = wb[2 * l][...]                            # (H_out, H_in), matmul dtype
            b = wb[2 * l + 1][...]                        # (H_out, 1), f32
            h = jnp.dot(w, h.astype(w.dtype),
                        preferred_element_type=jnp.float32) + b
            h = jnp.maximum(h, 0.0)                       # ReLU in f32 on the VPU

        wf = wb[2 * num_hidden][...]                      # (H_last, 1), f32
        bf = wb[2 * num_hidden + 1][...]                  # (1, 1), f32
        # Final Linear -> 1: VPU multiply + sublane reduction; the result is a
        # lane-dense (1, bt) row so the store is an unmasked vst.
        pred = jnp.sum(h * wf, axis=0, keepdims=True) + bf
        o_ref[...] = pred.astype(o_ref.dtype)

    return kernel


def lwnn_forward(x, params, *, batch_tile=2048, matmul_dtype=jnp.bfloat16):
    """Forward pass of LWNNModel.

    params = (w0, b0, ..., w_{L-1}, b_{L-1}, wf, bf) in torch nn.Linear layout:
    hidden weights [out, in], biases [out]; final weight [1, H_last], final
    bias [1].  Returns f32 predictions of shape [batch, 1].
    """
    params = list(params)
    assert len(params) >= 4 and len(params) % 2 == 0, "need >=1 hidden layer + final"
    num_hidden = len(params) // 2 - 1

    B, D_in = x.shape

    # Hidden layers: torch-layout weights in the MXU dtype, biases as f32 columns.
    ws = [params[2 * l].astype(matmul_dtype) for l in range(num_hidden)]
    bs = [params[2 * l + 1].reshape(-1, 1).astype(jnp.float32)
          for l in range(num_hidden)]
    # Final Linear(H_last, 1): weight as an (H_last, 1) f32 column, bias (1, 1).
    wf = params[-2].reshape(-1, 1).astype(jnp.float32)
    bf = params[-1].reshape(1, 1).astype(jnp.float32)

    # Batch tile: multiple of 128 (lane-dense output), VMEM-safe cap, and
    # capped further so the grid keeps >= ~4 pipelined steps when possible.
    bt = max(128, (int(batch_tile) // 128) * 128)
    bt = min(bt, 2048)
    bt = min(bt, max(128, _round_up(pl.cdiv(B, 4), 128)))
    grid = pl.cdiv(B, bt)
    b_ceil = grid * bt

    def const_spec(a):
        # Constant block index -> stays VMEM-resident across the batch grid.
        return pl.BlockSpec(a.shape, lambda i: (0, 0))

    # x tile; the ragged last block (if B % bt != 0) relies on Pallas'
    # OOB-read padding — no wrapper-side jnp.pad copy of x.
    in_specs = [pl.BlockSpec((bt, D_in), lambda i: (i, 0))]
    flat_wb = []
    for w, b in zip(ws, bs):
        in_specs += [const_spec(w), const_spec(b)]
        flat_wb += [w, b]
    in_specs += [const_spec(wf), const_spec(bf)]
    flat_wb += [wf, bf]

    out = pl.pallas_call(
        _make_mlp_kernel(num_hidden),
        out_shape=jax.ShapeDtypeStruct((1, b_ceil), jnp.float32),
        grid_spec=pltpu.PrefetchScalarGridSpec(
            num_scalar_prefetch=0,
            grid=(grid,),
            in_specs=in_specs,
            out_specs=pl.BlockSpec((1, bt), lambda i: (0, i)),
        ),
        compiler_params=pltpu.CompilerParams(
            dimension_semantics=("parallel",),
        ),
    )(x, *flat_wb)

    # Lane-dense (1, b_ceil) row -> (B, 1); padded trailing columns (derived
    # from the OOB-read rows of the last x block) are dropped here.
    return out[0, :B, None]


def init_params(key, input_len, hid_units):
    """Deterministic init matching LWNNModel(input_len, hid_units), torch layout.

    nn.Linear(in, out): weight [out, in], bias [out], init ~ U(-1/sqrt(in), 1/sqrt(in)).
    Final Linear(H_last, 1): weight [1, H_last], bias [1].
    """
    dims = [input_len] + [int(u) for u in hid_units.split("_")] + [1]
    params = []
    for l in range(len(dims) - 1):
        fan_in, fan_out = dims[l], dims[l + 1]
        key, kw, kb = jax.random.split(key, 3)
        bound = 1.0 / (fan_in ** 0.5)
        w = jax.random.uniform(kw, (fan_out, fan_in), jnp.float32, -bound, bound)
        b = jax.random.uniform(kb, (fan_out,), jnp.float32, -bound, bound)
        params += [w, b]
    return tuple(params)


def reference_forward(x, params, *, matmul_dtype=jnp.float32):
    """Pure-JAX reference of LWNNModel.forward (torch-layout params).

    matmul_dtype=jnp.bfloat16 mimics the kernel's bf16-operand / f32-accum path.
    """
    params = list(params)
    num_hidden = len(params) // 2 - 1
    h = x.astype(jnp.float32)
    for l in range(num_hidden):
        w = params[2 * l].astype(matmul_dtype)            # (out, in)
        b = params[2 * l + 1].reshape(1, -1).astype(jnp.float32)
        h = jnp.dot(h.astype(matmul_dtype), w.T,
                    preferred_element_type=jnp.float32) + b
        h = jnp.maximum(h, 0.0)
    wf = params[-2].reshape(1, -1).astype(jnp.float32)     # (1, H_last)
    bf = params[-1].reshape(1, 1).astype(jnp.float32)
    # Final Linear -> 1 as an explicit f32 multiply + sum (matches the kernel's
    # exact-f32 final layer, independent of XLA's default matmul precision).
    return jnp.sum(h * wf, axis=-1, keepdims=True) + bf


if __name__ == "__main__":
    key = jax.random.PRNGKey(0)
    # LWNNModel(input_len=32, hid_units="64_32")
    input_len = 32
    hid_units = "64_32"

    kx, kx2, kp = jax.random.split(key, 3)
    params = init_params(kp, input_len, hid_units)

    # Batch NOT a multiple of the 128-row tile -> exercises the ragged last
    # block path (no jnp.pad copy is issued).  bt=128, grid=2.
    batch = 200
    x = jax.random.normal(kx, (batch, input_len), jnp.float32)

    out = jax.block_until_ready(lwnn_forward(x, params))
    assert out.shape == (batch, 1)

    # Tight check vs a reference that matches the kernel's bf16-operand /
    # f32-accumulation matmuls.
    ref_bf16 = reference_forward(x, params, matmul_dtype=jnp.bfloat16)
    assert jnp.allclose(out, ref_bf16, atol=1e-3, rtol=1e-3), "mismatch (bf16 ref)"

    # Loose sanity check vs the pure-f32 reference (PyTorch semantics).
    ref_f32 = reference_forward(x, params)
    assert jnp.allclose(out, ref_f32, atol=5e-2, rtol=5e-2), "mismatch (f32 ref)"

    # f32 matmul path (bit-closer torch parity; cheap since the MXU has slack).
    out_f32 = jax.block_until_ready(
        lwnn_forward(x, params, matmul_dtype=jnp.float32))
    assert out_f32.shape == (batch, 1)
    assert jnp.allclose(out_f32, ref_f32, atol=5e-2, rtol=5e-2), "mismatch (f32 kernel)"

    # Larger ragged batch -> multi-step pipelined grid (bt=256, grid=3).
    batch2 = 600
    x2 = jax.random.normal(kx2, (batch2, input_len), jnp.float32)
    out2 = jax.block_until_ready(lwnn_forward(x2, params))
    ref2 = reference_forward(x2, params, matmul_dtype=jnp.bfloat16)
    assert out2.shape == (batch2, 1)
    assert jnp.allclose(out2, ref2, atol=1e-3, rtol=1e-3), "mismatch (batch2)"

    print("KERNEL_OK")
</pallas_src>

<mosaic_0001>
module attributes {stable_mosaic.version = 11 : i64} {
  func.func @kernel(%arg0: i32, %arg1: memref<128x32xf32, #tpu.memory_space<vmem>>, %arg2: memref<64x32xbf16, #tpu.memory_space<vmem>>, %arg3: memref<64x1xf32, #tpu.memory_space<vmem>>, %arg4: memref<32x64xbf16, #tpu.memory_space<vmem>>, %arg5: memref<32x1xf32, #tpu.memory_space<vmem>>, %arg6: memref<32x1xf32, #tpu.memory_space<vmem>>, %arg7: memref<1x1xf32, #tpu.memory_space<vmem>>, %arg8: memref<1x128xf32, #tpu.memory_space<vmem>>) attributes {dimension_semantics = [#tpu.dimension_semantics<parallel>], iteration_bounds = array<i64: 2>, scalar_prefetch = 0 : i64, scratch_operands = 0 : i64, tpu.core_type = #tpu.core_type<tc>, window_params = [{transform_indices = @transform_0, window_bounds = array<i64: 128, 32>}, {pipeline_mode = #tpu.pipeline_mode<synchronous>, transform_indices = @transform_1, window_bounds = array<i64: 64, 32>}, {pipeline_mode = #tpu.pipeline_mode<synchronous>, transform_indices = @transform_2, window_bounds = array<i64: 64, 1>}, {pipeline_mode = #tpu.pipeline_mode<synchronous>, transform_indices = @transform_3, window_bounds = array<i64: 32, 64>}, {pipeline_mode = #tpu.pipeline_mode<synchronous>, transform_indices = @transform_4, window_bounds = array<i64: 32, 1>}, {pipeline_mode = #tpu.pipeline_mode<synchronous>, transform_indices = @transform_5, window_bounds = array<i64: 32, 1>}, {pipeline_mode = #tpu.pipeline_mode<synchronous>, transform_indices = @transform_6, window_bounds = array<i64: 1, 1>}, {transform_indices = @transform_7, window_bounds = array<i64: 1, 128>}]} {
    %c0 = arith.constant 0 : index
    %c0_0 = arith.constant 0 : index
    %0 = vector.load %arg1[%c0, %c0_0] : memref<128x32xf32, #tpu.memory_space<vmem>>, vector<128x32xf32>
    %1 = tpu.transpose %0, [1, 0] : vector<128x32xf32> -> vector<32x128xf32>
    %c0_1 = arith.constant 0 : index
    %c0_2 = arith.constant 0 : index
    %2 = vector.load %arg2[%c0_1, %c0_2] : memref<64x32xbf16, #tpu.memory_space<vmem>>, vector<64x32xbf16>
    %c0_3 = arith.constant 0 : index
    %c0_4 = arith.constant 0 : index
    %3 = vector.load %arg3[%c0_3, %c0_4] : memref<64x1xf32, #tpu.memory_space<vmem>>, vector<64x1xf32>
    %4 = arith.truncf %1 : vector<32x128xf32> to vector<32x128xbf16>
    %cst = arith.constant dense<0.000000e+00> : vector<64x128xf32>
    %5 = tpu.matmul %2, %4, %cst {dimension_numbers = #tpu.dot_dimension_numbers<[1], [0], [0], [1], [0, 0, 1, 1], [], []>} : vector<64x32xbf16>, vector<32x128xbf16>, vector<64x128xf32> -> vector<64x128xf32>
    %6 = vector.broadcast %3 : vector<64x1xf32> to vector<64x128xf32>
    %7 = arith.addf %5, %6 : vector<64x128xf32>
    %cst_5 = arith.constant 0.000000e+00 : f32
    %8 = vector.broadcast %cst_5 : f32 to vector<64x128xf32>
    %9 = arith.maximumf %7, %8 : vector<64x128xf32>
    %c0_6 = arith.constant 0 : index
    %c0_7 = arith.constant 0 : index
    %10 = vector.load %arg4[%c0_6, %c0_7] : memref<32x64xbf16, #tpu.memory_space<vmem>>, vector<32x64xbf16>
    %c0_8 = arith.constant 0 : index
    %c0_9 = arith.constant 0 : index
    %11 = vector.load %arg5[%c0_8, %c0_9] : memref<32x1xf32, #tpu.memory_space<vmem>>, vector<32x1xf32>
    %12 = arith.truncf %9 : vector<64x128xf32> to vector<64x128xbf16>
    %cst_10 = arith.constant dense<0.000000e+00> : vector<32x128xf32>
    %13 = tpu.matmul %10, %12, %cst_10 {dimension_numbers = #tpu.dot_dimension_numbers<[1], [0], [0], [1], [0, 0, 1, 1], [], []>} : vector<32x64xbf16>, vector<64x128xbf16>, vector<32x128xf32> -> vector<32x128xf32>
    %14 = vector.broadcast %11 : vector<32x1xf32> to vector<32x128xf32>
    %15 = arith.addf %13, %14 : vector<32x128xf32>
    %cst_11 = arith.constant 0.000000e+00 : f32
    %16 = vector.broadcast %cst_11 : f32 to vector<32x128xf32>
    %17 = arith.maximumf %15, %16 : vector<32x128xf32>
    %c0_12 = arith.constant 0 : index
    %c0_13 = arith.constant 0 : index
    %18 = vector.load %arg6[%c0_12, %c0_13] : memref<32x1xf32, #tpu.memory_space<vmem>>, vector<32x1xf32>
    %c0_14 = arith.constant 0 : index
    %c0_15 = arith.constant 0 : index
    %19 = vector.load %arg7[%c0_14, %c0_15] : memref<1x1xf32, #tpu.memory_space<vmem>>, vector<1x1xf32>
    %20 = vector.broadcast %18 : vector<32x1xf32> to vector<32x128xf32>
    %21 = arith.mulf %17, %20 : vector<32x128xf32>
    %cst_16 = arith.constant dense<0.000000e+00> : vector<128xf32>
    %22 = vector.multi_reduction <add>, %21, %cst_16 [0] : vector<32x128xf32> to vector<128xf32>
    %23 = vector.shape_cast %22 : vector<128xf32> to vector<1x128xf32>
    %24 = vector.broadcast %19 : vector<1x1xf32> to vector<1x128xf32>
    %25 = arith.addf %23, %24 : vector<1x128xf32>
    %c0_17 = arith.constant 0 : index
    %c0_18 = arith.constant 0 : index
    %26 = vector.load %arg8[%c0_17, %c0_18] : memref<1x128xf32, #tpu.memory_space<vmem>>, vector<1x128xf32>
    tpu.vector_store %arg8[%c0_17, %c0_18], %25 {strides = array<i32>} : memref<1x128xf32, #tpu.memory_space<vmem>>, vector<1x128xf32>,
    return
  }
  func.func @transform_0(%arg0: i32) -> (i32, i32) {
    %c0_i32 = arith.constant 0 : i32
    %c0_i32_0 = arith.constant 0 : i32
    return %arg0, %c0_i32 : i32, i32
  }
  func.func @transform_1(%arg0: i32) -> (i32, i32) {
    %c0_i32 = arith.constant 0 : i32
    %c0_i32_0 = arith.constant 0 : i32
    %c0_i32_1 = arith.constant 0 : i32
    return %c0_i32, %c0_i32_0 : i32, i32
  }
  func.func @transform_2(%arg0: i32) -> (i32, i32) {
    %c0_i32 = arith.constant 0 : i32
    %c0_i32_0 = arith.constant 0 : i32
    %c0_i32_1 = arith.constant 0 : i32
    return %c0_i32, %c0_i32_0 : i32, i32
  }
  func.func @transform_3(%arg0: i32) -> (i32, i32) {
    %c0_i32 = arith.constant 0 : i32
    %c0_i32_0 = arith.constant 0 : i32
    %c0_i32_1 = arith.constant 0 : i32
    return %c0_i32, %c0_i32_0 : i32, i32
  }
  func.func @transform_4(%arg0: i32) -> (i32, i32) {
    %c0_i32 = arith.constant 0 : i32
    %c0_i32_0 = arith.constant 0 : i32
    %c0_i32_1 = arith.constant 0 : i32
    return %c0_i32, %c0_i32_0 : i32, i32
  }
  func.func @transform_5(%arg0: i32) -> (i32, i32) {
    %c0_i32 = arith.constant 0 : i32
    %c0_i32_0 = arith.constant 0 : i32
    %c0_i32_1 = arith.constant 0 : i32
    return %c0_i32, %c0_i32_0 : i32, i32
  }
  func.func @transform_6(%arg0: i32) -> (i32, i32) {
    %c0_i32 = arith.constant 0 : i32
    %c0_i32_0 = arith.constant 0 : i32
    %c0_i32_1 = arith.constant 0 : i32
    return %c0_i32, %c0_i32_0 : i32, i32
  }
  func.func @transform_7(%arg0: i32) -> (i32, i32) {
    %c0_i32 = arith.constant 0 : i32
    %c0_i32_0 = arith.constant 0 : i32
    return %c0_i32, %arg0 : i32, i32
  }
}

</mosaic_0001>

<llo_original>
// kernel: tpu_custom_call.1
$region0: #{tpu_custom_call.1}
  #allocation0 [shape = 'u32[]', space=smem, size = 0x4, offset = 0x4, fixed_abs, tag = 'smem constant byte address 0x4 - core index']
  #allocation1 [shape = 'u32[72,128]{1,0:T(1,128)}', space=vmem, size = 0x9000, scoped, tag = 'internal scratch']
  #allocation2 [shape = 'f32[1,1]{1,0:T(1,128)S(1)}', space=vmem, size = 0x200, scoped, tag = 'scoped memory for tpu_custom_call.1']
  %s0 = inlined_call_operand.vmem [shape: f32[200,32], index: 0, kind: input, shape index: {}]
  %s1 = inlined_call_operand.vmem [shape: bf16[64,32], index: 1, kind: input, shape index: {}]
  %s2 = inlined_call_operand.vmem [shape: f32[64,1], index: 2, kind: input, shape index: {}]
  %s3 = inlined_call_operand.vmem [shape: bf16[32,64], index: 3, kind: input, shape index: {}]
  %s4 = inlined_call_operand.vmem [shape: f32[32,1], index: 4, kind: input, shape index: {}]
  %s5 = inlined_call_operand.vmem [shape: f32[32,1], index: 5, kind: input, shape index: {}]
  %s6 = inlined_call_operand.<no memory space> [shape: f32[1,1], index: 6, kind: input, shape index: {}]
  %s7 = inlined_call_operand.hbm [shape: f32[1,256], index: 7, kind: output, shape index: {}]
  %s8 = sld [smem:[#allocation0]]
  $region61: #{tpu_custom_call.1} parent=0
    _
  %s10 = ssub.s32 1, %s8
  %s11 = scalar_select 0, %s10, %s8
  %v12 = vstv %s6
  %13 = vst [vmem:[#allocation2] sm:$0x1] %v12
  $region1: #{tpu_custom_call.1} parent=0
    #allocation3 [shape = 'u8[1024]{0}', space=vmem, size = 0x400, scoped, tag = 'output window, operand 0']
    #allocation4 [shape = 's32[2]{0}', space=sflag, size = 0x8, scoped, tag = 'scoped memory for tpu_custom_call.1']
    %14 = vsyncpa [#allocation4], 0
    %s15 = scalar_lea.sflag [#allocation4], 1
    %16 = vsyncpa %s15, 0
    loop: start=0, step=1, limit=4
    $region2: #{tpu_custom_call.1} parent=1 // loop_pre_header
      _
    $region3: #{tpu_custom_call.1} parent=1 // loop_header
      %s18 = sphi 0, %s22
      %p19 = scmp.ge.s32.totalorder %s18, 4
      %s28 = sphi 0, %s30
      %s31 = sphi 0, %s28
      %s32 = sphi 0, %s31
      %s48 = sphi 0, %s32
      %s52 = sphi 0, %s52
      %s54 = sphi 0, %s52
      %s55 = sphi 0, %s54
      %s69 = sphi 0, %s55
      %s73 = sphi 0, %s73
      %s75 = sphi 0, %s73
      %s76 = sphi 0, %s75
      %s90 = sphi 0, %s76
      %s94 = sphi 0, %s94
      %s96 = sphi 0, %s94
      %s97 = sphi 0, %s96
      %s111 = sphi 0, %s97
      %s115 = sphi 0, %s115
      %s117 = sphi 0, %s115
      %s118 = sphi 0, %s117
      %s132 = sphi 0, %s118
      %s136 = sphi 0, %s136
      %s138 = sphi 0, %s136
      %s139 = sphi 0, %s138
      %s153 = sphi 0, %s139
      %s157 = sphi 0, %s157
      %s159 = sphi 0, %s157
      %s160 = sphi 0, %s159
      %s174 = sphi 0, %s160
      %s180 = sphi 0, %s182
      %s183 = sphi 0, %s180
      %s184 = sphi 0, %s183
      %s200 = sphi 0, %s184
    $region4: #{tpu_custom_call.1} parent=1 // loop_header_branch
      %21 = sbr.rel (%p19) target = $region8
    $region5: #{tpu_custom_call.1} parent=1 // loop_body
      %s23 = ssub.s32 %s18, 1
      %s24 = ssub.s32 %s18, 2
      %s25 = sadd.s32 %s18, 1
      %s26 = ssub.s32 %s18, %s25
      %p27 = scmp.eq.s32.totalorder %s26, 0
      %s29 = sadd.s32 %s28, 1
      %s30 = scalar_select %p27, %s28, %s29
      %p33 = pneg %p27
      %p34 = scmp.eq.s32.totalorder %s18, 1
      %p35 = por %p33, %p34
      %p36 = scmp.ne.s32.totalorder %s28, %s31
      %p37 = scmp.eq.s32.totalorder %s18, 0
      %p38 = por %p36, %p37
      %p39 = scmp.ne.s32.totalorder %s28, %s31
      %p40 = scmp.eq.s32.totalorder %s23, 1
      %p41 = por %p39, %p40
      %p42 = scmp.ne.s32.totalorder %s31, %s32
      %p43 = scmp.eq.s32.totalorder %s23, 0
      %p44 = por %p42, %p43
      %p45 = scmp.ne.s32.totalorder %s31, %s32
      %p46 = scmp.eq.s32.totalorder %s24, 1
      %p47 = por %p45, %p46
      %p49 = scmp.ne.s32.totalorder %s32, %s48
      %p50 = scmp.eq.s32.totalorder %s24, 0
      %p51 = por %p49, %p50
      %s53 = sadd.s32 %s52, 1
      %p56 = scmp.eq.s32.totalorder %s18, 1
      %p57 = scmp.ne.s32.totalorder %s52, %s54
      %p58 = scmp.eq.s32.totalorder %s18, 0
      %p59 = por %p57, %p58
      %p60 = scmp.ne.s32.totalorder %s52, %s54
      %p61 = scmp.eq.s32.totalorder %s23, 1
      %p62 = por %p60, %p61
      %p63 = scmp.ne.s32.totalorder %s54, %s55
      %p64 = scmp.eq.s32.totalorder %s23, 0
      %p65 = por %p63, %p64
      %p66 = scmp.ne.s32.totalorder %s54, %s55
      %p67 = scmp.eq.s32.totalorder %s24, 1
      %p68 = por %p66, %p67
      %p70 = scmp.ne.s32.totalorder %s55, %s69
      %p71 = scmp.eq.s32.totalorder %s24, 0
      %p72 = por %p70, %p71
      %s74 = sadd.s32 %s73, 1
      %p77 = scmp.eq.s32.totalorder %s18, 1
      %p78 = scmp.ne.s32.totalorder %s73, %s75
      %p79 = scmp.eq.s32.totalorder %s18, 0
      %p80 = por %p78, %p79
      %p81 = scmp.ne.s32.totalorder %s73, %s75
      %p82 = scmp.eq.s32.totalorder %s23, 1
      %p83 = por %p81, %p82
      %p84 = scmp.ne.s32.totalorder %s75, %s76
      %p85 = scmp.eq.s32.totalorder %s23, 0
      %p86 = por %p84, %p85
      %p87 = scmp.ne.s32.totalorder %s75, %s76
      %p88 = scmp.eq.s32.totalorder %s24, 1
      %p89 = por %p87, %p88
      %p91 = scmp.ne.s32.totalorder %s76, %s90
      %p92 = scmp.eq.s32.totalorder %s24, 0
      %p93 = por %p91, %p92
      %s95 = sadd.s32 %s94, 1
      %p98 = scmp.eq.s32.totalorder %s18, 1
      %p99 = scmp.ne.s32.totalorder %s94, %s96
      %p100 = scmp.eq.s32.totalorder %s18, 0
      %p101 = por %p99, %p100
      %p102 = scmp.ne.s32.totalorder %s94, %s96
      %p103 = scmp.eq.s32.totalorder %s23, 1
      %p104 = por %p102, %p103
      %p105 = scmp.ne.s32.totalorder %s96, %s97
      %p106 = scmp.eq.s32.totalorder %s23, 0
      %p107 = por %p105, %p106
      %p108 = scmp.ne.s32.totalorder %s96, %s97
      %p109 = scmp.eq.s32.totalorder %s24, 1
      %p110 = por %p108, %p109
      %p112 = scmp.ne.s32.totalorder %s97, %s111
      %p113 = scmp.eq.s32.totalorder %s24, 0
      %p114 = por %p112, %p113
      %s116 = sadd.s32 %s115, 1
      %p119 = scmp.eq.s32.totalorder %s18, 1
      %p120 = scmp.ne.s32.totalorder %s115, %s117
      %p121 = scmp.eq.s32.totalorder %s18, 0
      %p122 = por %p120, %p121
      %p123 = scmp.ne.s32.totalorder %s115, %s117
      %p124 = scmp.eq.s32.totalorder %s23, 1
      %p125 = por %p123, %p124
      %p126 = scmp.ne.s32.totalorder %s117, %s118
      %p127 = scmp.eq.s32.totalorder %s23, 0
      %p128 = por %p126, %p127
      %p129 = scmp.ne.s32.totalorder %s117, %s118
      %p130 = scmp.eq.s32.totalorder %s24, 1
      %p131 = por %p129, %p130
      %p133 = scmp.ne.s32.totalorder %s118, %s132
      %p134 = scmp.eq.s32.totalorder %s24, 0
      %p135 = por %p133, %p134
      %s137 = sadd.s32 %s136, 1
      %p140 = scmp.eq.s32.totalorder %s18, 1
      %p141 = scmp.ne.s32.totalorder %s136, %s138
      %p142 = scmp.eq.s32.totalorder %s18, 0
      %p143 = por %p141, %p142
      %p144 = scmp.ne.s32.totalorder %s136, %s138
      %p145 = scmp.eq.s32.totalorder %s23, 1
      %p146 = por %p144, %p145
      %p147 = scmp.ne.s32.totalorder %s138, %s139
      %p148 = scmp.eq.s32.totalorder %s23, 0
      %p149 = por %p147, %p148
      %p150 = scmp.ne.s32.totalorder %s138, %s139
      %p151 = scmp.eq.s32.totalorder %s24, 1
      %p152 = por %p150, %p151
      %p154 = scmp.ne.s32.totalorder %s139, %s153
      %p155 = scmp.eq.s32.totalorder %s24, 0
      %p156 = por %p154, %p155
      %s158 = sadd.s32 %s157, 1
      %p161 = scmp.eq.s32.totalorder %s18, 1
      %p162 = scmp.ne.s32.totalorder %s157, %s159
      %p163 = scmp.eq.s32.totalorder %s18, 0
      %p164 = por %p162, %p163
      %p165 = scmp.ne.s32.totalorder %s157, %s159
      %p166 = scmp.eq.s32.totalorder %s23, 1
      %p167 = por %p165, %p166
      %p168 = scmp.ne.s32.totalorder %s159, %s160
      %p169 = scmp.eq.s32.totalorder %s23, 0
      %p170 = por %p168, %p169
      %p171 = scmp.ne.s32.totalorder %s159, %s160
      %p172 = scmp.eq.s32.totalorder %s24, 1
      %p173 = por %p171, %p172
      %p175 = scmp.ne.s32.totalorder %s160, %s174
      %p176 = scmp.eq.s32.totalorder %s24, 0
      %p177 = por %p175, %p176
      %s178 = ssub.s32 %s18, %s25
      %p179 = scmp.eq.s32.totalorder %s178, 0
      %s181 = sadd.s32 %s180, 1
      %s182 = scalar_select %p179, %s180, %s181
      %p185 = pneg %p179
      %p186 = scmp.eq.s32.totalorder %s18, 1
      %p187 = por %p185, %p186
      %p188 = scmp.ne.s32.totalorder %s180, %s183
      %p189 = scmp.eq.s32.totalorder %s18, 0
      %p190 = por %p188, %p189
      %p191 = scmp.ne.s32.totalorder %s180, %s183
      %p192 = scmp.eq.s32.totalorder %s23, 1
      %p193 = por %p191, %p192
      %p194 = scmp.ne.s32.totalorder %s183, %s184
      %p195 = scmp.eq.s32.totalorder %s23, 0
      %p196 = por %p194, %p195
      %p197 = scmp.ne.s32.totalorder %s183, %s184
      %p198 = scmp.eq.s32.totalorder %s24, 1
      %p199 = por %p197, %p198
      %p201 = scmp.ne.s32.totalorder %s184, %s200
      %p202 = scmp.eq.s32.totalorder %s24, 0
      %p203 = por %p201, %p202
      %p204 = scmp.le.s32.totalorder 1, %s18
      %p205 = scmp.lt.s32.totalorder %s18, 3
      %p206 = pnand %p204, %p205
      %p207 = pneg %p206
      // Predicated region
      $region9: #{tpu_custom_call.1} parent=5 // pred_check
        _
      $region10: #{tpu_custom_call.1} parent=5 // pred_check_branch
        %209 = sbr.rel (%p206) target = $region12
      $region11: #{tpu_custom_call.1} parent=5 // pred_region
        %s210 = ssub.s32 %s18, 1
        // Predicated region
        $region13: #{tpu_custom_call.1} parent=11 // pred_check
          %p211 = pneg %p65
        $region14: #{tpu_custom_call.1} parent=11 // pred_check_branch
          %213 = sbr.rel (%p211) target = $region16
        $region15: #{tpu_custom_call.1} parent=11 // pred_region
          _
        $region16: #{tpu_custom_call.1} parent=11 // pred_fallthru
          _
        // Predicated region
        $region17: #{tpu_custom_call.1} parent=11 // pred_check
          %p214 = pneg %p86
        $region18: #{tpu_custom_call.1} parent=11 // pred_check_branch
          %216 = sbr.rel (%p214) target = $region20
        $region19: #{tpu_custom_call.1} parent=11 // pred_region
          _
        $region20: #{tpu_custom_call.1} parent=11 // pred_fallthru
          _
        // Predicated region
        $region21: #{tpu_custom_call.1} parent=11 // pred_check
          %p217 = pneg %p107
        $region22: #{tpu_custom_call.1} parent=11 // pred_check_branch
          %219 = sbr.rel (%p217) target = $region24
        $region23: #{tpu_custom_call.1} parent=11 // pred_region
          _
        $region24: #{tpu_custom_call.1} parent=11 // pred_fallthru
          _
        // Predicated region
        $region25: #{tpu_custom_call.1} parent=11 // pred_check
          %p220 = pneg %p128
        $region26: #{tpu_custom_call.1} parent=11 // pred_check_branch
          %222 = sbr.rel (%p220) target = $region28
        $region27: #{tpu_custom_call.1} parent=11 // pred_region
          _
        $region28: #{tpu_custom_call.1} parent=11 // pred_fallthru
          _
        // Predicated region
        $region29: #{tpu_custom_call.1} parent=11 // pred_check
          %p223 = pneg %p149
        $region30: #{tpu_custom_call.1} parent=11 // pred_check_branch
          %225 = sbr.rel (%p223) target = $region32
        $region31: #{tpu_custom_call.1} parent=11 // pred_region
          _
        $region32: #{tpu_custom_call.1} parent=11 // pred_fallthru
          _
        // Predicated region
        $region33: #{tpu_custom_call.1} parent=11 // pred_check
          %p226 = pneg %p170
        $region34: #{tpu_custom_call.1} parent=11 // pred_check_branch
          %228 = sbr.rel (%p226) target = $region36
        $region35: #{tpu_custom_call.1} parent=11 // pred_region
          _
        $region36: #{tpu_custom_call.1} parent=11 // pred_fallthru
          _
      $region12: #{tpu_custom_call.1} parent=5 // pred_fallthru
        _
      %p229 = scmp.lt.s32.totalorder %s18, 2
      // Predicated region
      $region37: #{tpu_custom_call.1} parent=5 // pred_check
        %p230 = pneg %p229
      $region38: #{tpu_custom_call.1} parent=5 // pred_check_branch
        %232 = sbr.rel (%p230) target = $region40
      $region39: #{tpu_custom_call.1} parent=5 // pred_region
        // Predicated region
        $region41: #{tpu_custom_call.1} parent=39 // pred_check
          %p233 = pneg %p38
        $region42: #{tpu_custom_call.1} parent=39 // pred_check_branch
          %235 = sbr.rel (%p233) target = $region44
        $region43: #{tpu_custom_call.1} parent=39 // pred_region
          %s236 = smul.u32 16, %s18
          %s237 = ssub.s32 25, %s236
          %p238 = scmp.lt.s32.totalorder %s237, 16
          %s239 = scalar_select %p238, %s237, 16
          %s240 = smul.u32 8, %s239
          %p241 = scmp.lt.s32.totalorder %s236, 24
          %s242 = scalar_select %p241, %s236, 24
          %s243 = smul.addr %s242, 8
          %s244 = scalar_lea.vmem %s0, %s243
          %s245 = smul.u32 16, %s18
          %s246 = ssub.s32 25, %s245
          %p247 = scmp.lt.s32.totalorder %s246, 16
          %s248 = scalar_select %p247, %s246, 16
          %s249 = smul.u32 8, %s248
        $region44: #{tpu_custom_call.1} parent=39 // pred_fallthru
          _
      $region40: #{tpu_custom_call.1} parent=5 // pred_fallthru
        _
      %p250 = scmp.le.s32.totalorder 1, %s18
      %p251 = scmp.lt.s32.totalorder %s18, 3
      %p252 = pnand %p250, %p251
      %p253 = pneg %p252
      // Predicated region
      $region45: #{tpu_custom_call.1} parent=5 // pred_check
        _
      $region46: #{tpu_custom_call.1} parent=5 // pred_check_branch
        %255 = sbr.rel (%p252) target = $region48
      $region47: #{tpu_custom_call.1} parent=5 // pred_region
        %s256 = ssub.s32 %s18, 1
        %s257 = smul.u32 16, %s23
        %s258 = ssub.s32 25, %s257
        %p259 = scmp.lt.s32.totalorder %s258, 16
        %s260 = scalar_select %p259, %s258, 16
        %s261 = smul.u32 8, %s260
        %p262 = scmp.lt.s32.totalorder %s257, 24
        %s263 = scalar_select %p262, %s257, 24
        %s264 = smul.addr %s263, 8
        %s265 = scalar_lea.vmem %s0, %s264
        %p266 = pneg %p44
        %p267 = pneg %p41
        %p268 = pneg %p65
        %p269 = pneg %p62
        %p270 = pneg %p86
        %p271 = pneg %p83
        %p272 = pneg %p107
        %p273 = pneg %p104
        %p274 = pneg %p128
        %p275 = pneg %p125
        %p276 = pneg %p149
        %p277 = pneg %p146
        %p278 = pneg %p170
        %p279 = pneg %p167
        %p280 = pneg %p196
        %p281 = pneg %p193
        %s282 = sand.u32 %s183, 1
        %s283 = scalar_lea.sflag [#allocation4], %s282
        %s284 = sand.u32 %s183, 1
        %s285 = scalar_lea.vmem [#allocation3], %s284
        %s286 = smul.u32 16, %s23
        %s287 = ssub.s32 25, %s286
        %p288 = scmp.lt.s32.totalorder %s287, 16
        %s289 = scalar_select %p288, %s287, 16
        %s290 = smul.u32 8, %s289
        %p291 = scmp.lt.s32.totalorder %s286, 24
        %s292 = scalar_select %p291, %s286, 24
        %s293 = smul.addr %s292, 8
        %s294 = scalar_lea.vmem %s0, %s293
        %s295 = smul.u32 16, %s23
        %s296 = ssub.s32 25, %s295
        %p297 = scmp.lt.s32.totalorder %s296, 16
        %s298 = scalar_select %p297, %s296, 16
        %s299 = smul.u32 8, %s298
        %v301 = vld [vmem:[%s294] sm:$0xff]
        %v302 = vld [vmem:[%s294 + $0x8] sm:$0xff]
        %v303 = vld [vmem:[%s294 + $0x10] sm:$0xff]
        %v304 = vld [vmem:[%s294 + $0x18] sm:$0xff]
        %v305 = vld [vmem:[%s294 + $0x20] sm:$0xff]
        %v306 = vld [vmem:[%s294 + $0x28] sm:$0xff]
        %v307 = vld [vmem:[%s294 + $0x30] sm:$0xff]
        %v308 = vld [vmem:[%s294 + $0x38] sm:$0xff]
        %v309 = vld [vmem:[%s294 + $0x40] sm:$0xff]
        %v310 = vld [vmem:[%s294 + $0x48] sm:$0xff]
        %v311 = vld [vmem:[%s294 + $0x50] sm:$0xff]
        %v312 = vld [vmem:[%s294 + $0x58] sm:$0xff]
        %v313 = vld [vmem:[%s294 + $0x60] sm:$0xff]
        %v314 = vld [vmem:[%s294 + $0x68] sm:$0xff]
        %v315 = vld [vmem:[%s294 + $0x70] sm:$0xff]
        %v316 = vld [vmem:[%s294 + $0x78] sm:$0xff]
        %317 = vxpose.xlu0.b32.start [1/16] %v301, 128
        %318 = vxpose.xlu0.b32.cont [2/16] %v302, 128
        %319 = vxpose.xlu0.b32.cont [3/16] %v303, 128
        %320 = vxpose.xlu0.b32.cont [4/16] %v304, 128
        %321 = vxpose.xlu0.b32.cont [5/16] %v305, 128
        %322 = vxpose.xlu0.b32.cont [6/16] %v306, 128
        %323 = vxpose.xlu0.b32.cont [7/16] %v307, 128
        %324 = vxpose.xlu0.b32.cont [8/16] %v308, 128
        %325 = vxpose.xlu0.b32.cont [9/16] %v309, 128
        %326 = vxpose.xlu0.b32.cont [10/16] %v310, 128
        %327 = vxpose.xlu0.b32.cont [11/16] %v311, 128
        %328 = vxpose.xlu0.b32.cont [12/16] %v312, 128
        %329 = vxpose.xlu0.b32.cont [13/16] %v313, 128
        %330 = vxpose.xlu0.b32.cont [14/16] %v314, 128
        %331 = vxpose.xlu0.b32.cont [15/16] %v315, 128
        %332 = vxpose.xlu0.b32.end [16/16] %v316, 128
        %v333 = vpop.trf.xlu0
        %v334 = vpop.trf.xlu0
        %v335 = vpop.trf.xlu0
        %v336 = vpop.trf.xlu0
        %v337 = vpop.trf.xlu0
        %v338 = vpop.trf.xlu0
        %v339 = vpop.trf.xlu0
        %v340 = vpop.trf.xlu0
        %v341 = vpop.trf.xlu0
        %v342 = vpop.trf.xlu0
        %v343 = vpop.trf.xlu0
        %v344 = vpop.trf.xlu0
        %v345 = vpop.trf.xlu0
        %v346 = vpop.trf.xlu0
        %v347 = vpop.trf.xlu0
        %v348 = vpop.trf.xlu0
        %v349 = vld [vmem:[%s1] sm:$0xf]
        %v350 = vld [vmem:[%s1 + $0x4] sm:$0xf]
        %v351 = vld [vmem:[%s1 + $0x8] sm:$0xf]
        %v352 = vld [vmem:[%s1 + $0xc] sm:$0xf]
        %v353 = vld [vmem:[%s1 + $0x10] sm:$0xf]
        %v354 = vld [vmem:[%s1 + $0x14] sm:$0xf]
        %v355 = vld [vmem:[%s1 + $0x18] sm:$0xf]
        %v356 = vld [vmem:[%s1 + $0x1c] sm:$0xf]
        %v357 = vld [vmem:[%s2] sm:$0xff]
        %v358 = vld [vmem:[%s2 + $0x8] sm:$0xff]
        %v359 = vld [vmem:[%s2 + $0x10] sm:$0xff]
        %v360 = vld [vmem:[%s2 + $0x18] sm:$0xff]
        %v361 = vld [vmem:[%s2 + $0x20] sm:$0xff]
        %v362 = vld [vmem:[%s2 + $0x28] sm:$0xff]
        %v363 = vld [vmem:[%s2 + $0x30] sm:$0xff]
        %v364 = vld [vmem:[%s2 + $0x38] sm:$0xff]
        %v365 = vpack.c.bf16 %v334, %v333
        %v366 = vpack.c.bf16 %v336, %v335
        %368 = vset.pattern.permute.xlu0 0
        %369 = vperm.xlu0 %368, %v357
        %v370 = vpop.permute.xlu0 %369
        %373 = vset.pattern.permute.xlu0 0
        %374 = vperm.xlu0 %373, %v358
        %v375 = vpop.permute.xlu0 %374
        %378 = vset.pattern.permute.xlu0 0
        %379 = vperm.xlu0 %378, %v359
        %v380 = vpop.permute.xlu0 %379
        %383 = vset.pattern.permute.xlu0 0
        %384 = vperm.xlu0 %383, %v360
        %v385 = vpop.permute.xlu0 %384
        %388 = vset.pattern.permute.xlu0 0
        %389 = vperm.xlu0 %388, %v361
        %v390 = vpop.permute.xlu0 %389
        %393 = vset.pattern.permute.xlu0 0
        %394 = vperm.xlu0 %393, %v362
        %v395 = vpop.permute.xlu0 %394
        %398 = vset.pattern.permute.xlu0 0
        %399 = vperm.xlu0 %398, %v363
        %v400 = vpop.permute.xlu0 %399
        %403 = vset.pattern.permute.xlu0 0
        %404 = vperm.xlu0 %403, %v364
        %v405 = vpop.permute.xlu0 %404
        %v415 = vunpack.c.l.b16 %v349
        %v416 = vunpack.c.l.b16 %v350
        %v417 = vunpack.c.l.b16 %v351
        %v418 = vunpack.c.l.b16 %v352
        %v419 = vunpack.c.l.b16 %v353
        %v420 = vunpack.c.l.b16 %v354
        %v421 = vunpack.c.l.b16 %v355
        %v422 = vunpack.c.l.b16 %v356
        %v423 = vpack.c.b16 %v416, %v415
        %v424 = vpack.c.b16 %v418, %v417
        %v425 = vpack.c.b16 %v420, %v419
        %v426 = vpack.c.b16 %v422, %v421
        %vm427 = vcmask 261120
        %v429 = vsel %vm427, %v423, 0
        %v432 = vsel %vm427, %v424, 0
        %v435 = vsel %vm427, %v425, 0
        %v438 = vsel %vm427, %v426, 0
        %440 = vmatpush.bf16.msra.mxu0 0
        %441 = vmatpush.bf16.msra.mxu0 0
        %442 = vmatpush.bf16.msra.mxu0 0
        %443 = vmatpush.bf16.msra.mxu0 0
        %444 = vmatpush.bf16.msra.mxu0 0
        %445 = vmatpush.bf16.msra.mxu0 0
        %446 = vmatpush.bf16.msra.mxu0 %v366
        %447 = vmatpush.bf16.msra.mxu0 %v365
        %448 = vmatmul.bf16.gmra.mxu0 %v429
        %v449 = vpop.f32.mrf.mxu0
        %v450 = vadd.f32 %v370, %v449
        %v451 = vpop.f32.mrf.mxu0
        %v452 = vadd.f32 %v375, %v451
        %453 = vmatmul.bf16.gmra.mxu0 %v432
        %v454 = vpop.f32.mrf.mxu0
        %v455 = vadd.f32 %v380, %v454
        %v456 = vpop.f32.mrf.mxu0
        %v457 = vadd.f32 %v385, %v456
        %458 = vmatmul.bf16.gmra.mxu0 %v435
        %v459 = vpop.f32.mrf.mxu0
        %v460 = vadd.f32 %v390, %v459
        %v461 = vpop.f32.mrf.mxu0
        %v462 = vadd.f32 %v395, %v461
        %463 = vmatmul.bf16.gmra.mxu0 %v438
        %v464 = vpop.f32.mrf.mxu0
        %v465 = vadd.f32 %v400, %v464
        %v466 = vpop.f32.mrf.mxu0
        %v467 = vadd.f32 %v405, %v466
        %468 = vdwg.mxu0
        %v469 = vmax.f32 %v450, 0.0
        %v470 = vmax.f32 %v452, 0.0
        %v471 = vmax.f32 %v455, 0.0
        %v472 = vmax.f32 %v457, 0.0
        %v473 = vmax.f32 %v460, 0.0
        %v474 = vmax.f32 %v462, 0.0
        %v475 = vmax.f32 %v465, 0.0
        %v476 = vmax.f32 %v467, 0.0
        %v477 = vld [vmem:[%s3] sm:$0xf]
        %v478 = vld [vmem:[%s3 + $0x4] sm:$0xf]
        %v479 = vld [vmem:[%s3 + $0x8] sm:$0xf]
        %v480 = vld [vmem:[%s3 + $0xc] sm:$0xf]
        %v481 = vld [vmem:[%s4] sm:$0xff]
        %v482 = vld [vmem:[%s4 + $0x8] sm:$0xff]
        %v483 = vld [vmem:[%s4 + $0x10] sm:$0xff]
        %v484 = vld [vmem:[%s4 + $0x18] sm:$0xff]
        %v485 = vpack.c.bf16 %v470, %v469
        %v486 = vpack.c.bf16 %v472, %v471
        %v487 = vpack.c.bf16 %v474, %v473
        %v488 = vpack.c.bf16 %v476, %v475
        %490 = vset.pattern.permute.xlu0 0
        %491 = vperm.xlu0 %490, %v481
        %v492 = vpop.permute.xlu0 %491
        %495 = vset.pattern.permute.xlu0 0
        %496 = vperm.xlu0 %495, %v482
        %v497 = vpop.permute.xlu0 %496
        %500 = vset.pattern.permute.xlu0 0
        %501 = vperm.xlu0 %500, %v483
        %v502 = vpop.permute.xlu0 %501
        %505 = vset.pattern.permute.xlu0 0
        %506 = vperm.xlu0 %505, %v484
        %v507 = vpop.permute.xlu0 %506
        %v513 = vunpack.c.l.b16 %v477
        %v514 = vunpack.c.l.b16 %v478
        %v515 = vunpack.c.l.b16 %v479
        %v516 = vunpack.c.l.b16 %v480
        %v517 = vpack.c.b16 %v514, %v513
        %v518 = vpack.c.b16 %v516, %v515
        %vm519 = vcmask 523264
        %v521 = vsel %vm519, %v517, 0
        %v524 = vsel %vm519, %v518, 0
        %526 = vmatpush.bf16.msra.mxu0 0
        %527 = vmatpush.bf16.msra.mxu0 0
        %528 = vmatpush.bf16.msra.mxu0 0
        %529 = vmatpush.bf16.msra.mxu0 0
        %530 = vmatpush.bf16.msra.mxu0 %v488
        %531 = vmatpush.bf16.msra.mxu0 %v487
        %532 = vmatpush.bf16.msra.mxu0 %v486
        %533 = vmatpush.bf16.msra.mxu0 %v485
        %534 = vmatmul.bf16.gmra.mxu0 %v521
        %v535 = vpop.f32.mrf.mxu0
        %v536 = vadd.f32 %v492, %v535
        %v537 = vpop.f32.mrf.mxu0
        %v538 = vadd.f32 %v497, %v537
        %539 = vmatmul.bf16.gmra.mxu0 %v524
        %v540 = vpop.f32.mrf.mxu0
        %v541 = vadd.f32 %v502, %v540
        %v542 = vpop.f32.mrf.mxu0
        %v543 = vadd.f32 %v507, %v542
        %544 = vdwg.mxu0
        %v545 = vmax.f32 %v536, 0.0
        %v546 = vmax.f32 %v538, 0.0
        %v547 = vmax.f32 %v541, 0.0
        %v548 = vmax.f32 %v543, 0.0
        %v549 = vld [vmem:[%s5] sm:$0xff]
        %v550 = vld [vmem:[%s5 + $0x8] sm:$0xff]
        %v551 = vld [vmem:[%s5 + $0x10] sm:$0xff]
        %v552 = vld [vmem:[%s5 + $0x18] sm:$0xff]
        %v553 = vld [vmem:[#allocation2] sm:$0x1]
        %555 = vset.pattern.permute.xlu0 0
        %556 = vperm.xlu0 %555, %v549
        %v557 = vpop.permute.xlu0 %556
        %560 = vset.pattern.permute.xlu0 0
        %561 = vperm.xlu0 %560, %v550
        %v562 = vpop.permute.xlu0 %561
        %565 = vset.pattern.permute.xlu0 0
        %566 = vperm.xlu0 %565, %v551
        %v567 = vpop.permute.xlu0 %566
        %570 = vset.pattern.permute.xlu0 0
        %571 = vperm.xlu0 %570, %v552
        %v572 = vpop.permute.xlu0 %571
        %v574 = vmul.f32 %v545, %v557
        %v575 = vmul.f32 %v546, %v562
        %v576 = vmul.f32 %v547, %v567
        %v577 = vmul.f32 %v548, %v572
        %v578 = vadd.f32 %v574, %v575
        %v579 = vadd.f32 %v578, %v576
        %v580 = vadd.f32 %v579, %v577
        %v581 = vrot.slane %v580, 4
        %v582 = vadd.f32 %v580, %v581
        %v583 = vrot.slane %v582, 2
        %v584 = vadd.f32 %v582, %v583
        %v585 = vrot.slane %v584, 1
        %v586 = vadd.f32 %v584, %v585
        %588 = vset.pattern.permute.xlu0 0
        %589 = vperm.xlu0 %588, %v553
        %v590 = vpop.permute.xlu0 %589
        %v592 = vperm.slane %v590, 0
        %v593 = vadd.f32 %v586, %v592
        %594 = vst [vmem:[%s285] sm:$0x1] %v593
        %s595 = sand.u32 %s183, 1
        %s596 = scalar_lea.sflag [#allocation4], %s595
        %s597 = sand.u32 %s183, 1
        %s598 = scalar_lea.vmem [#allocation3], %s597
        // Predicated region
        $region49: #{tpu_custom_call.1} parent=47 // pred_check
          %p599 = pneg %p193
        $region50: #{tpu_custom_call.1} parent=47 // pred_check_branch
          %601 = sbr.rel (%p599) target = $region52
        $region51: #{tpu_custom_call.1} parent=47 // pred_region
          %603 = vsyncadd %s596, 0
          %s604 = scalar_lea.hbm %s7, %s23
          %s606 = sshll.u32 %s598, 4
          %s607 = int_to_ptr.vmem [resolvable:$true] %s606
          %s608 = sshll.u32 %s604, 4
          %s609 = int_to_ptr.hbm [resolvable:$true] %s608
          %611 = dma.vmem_to_hbm [thread:$0]  %s607, 16, %s609, %s596
        $region52: #{tpu_custom_call.1} parent=47 // pred_fallthru
          _
      $region48: #{tpu_custom_call.1} parent=5 // pred_fallthru
        _
      %p612 = scmp.le.s32.totalorder 2, %s18
      // Predicated region
      $region53: #{tpu_custom_call.1} parent=5 // pred_check
        %p613 = pneg %p612
      $region54: #{tpu_custom_call.1} parent=5 // pred_check_branch
        %615 = sbr.rel (%p613) target = $region56
      $region55: #{tpu_custom_call.1} parent=5 // pred_region
        %s616 = ssub.s32 %s18, 2
        // Predicated region
        $region57: #{tpu_custom_call.1} parent=55 // pred_check
          %p617 = pneg %p199
        $region58: #{tpu_custom_call.1} parent=55 // pred_check_branch
          %619 = sbr.rel (%p617) target = $region60
        $region59: #{tpu_custom_call.1} parent=55 // pred_region
          %s620 = sand.u32 %s184, 1
          %s621 = scalar_lea.sflag [#allocation4], %s620
          %s622 = sand.u32 %s184, 1
          %s623 = scalar_lea.vmem [#allocation3], %s622
          %625 = dma.done %s621, 16
        $region60: #{tpu_custom_call.1} parent=55 // pred_fallthru
          _
      $region56: #{tpu_custom_call.1} parent=5 // pred_fallthru
        _
    $region6: #{tpu_custom_call.1} parent=1 // loop_footer
      %s22 = sadd.s32 1, %s18
    $region7: #{tpu_custom_call.1} parent=1 // loop_footer_branch
      %17 = sbr.rel target = $region3
    $region8: #{tpu_custom_call.1} parent=1 // loop_exit
      _
    %626 = vsyncpa [#allocation4], 1
    %s627 = scalar_lea.sflag [#allocation4], 1
    %628 = vsyncpa %s627, 1

</llo_original>
